<compile_context>
chip_gen: v6e
topology: v6e:2x2x1
jax: 0.10.0
libtpu: 0.0.40
codegen_flags: <defaults>
</compile_context>

<pallas_src>
import functools

import numpy as np
import jax
import jax.numpy as jnp
from jax.experimental import pallas as pl
from jax.experimental.pallas import tpu as pltpu


def _p_losses_kernel(acol_ref, scol_ref, bias_ref,   # VMEM: (R,1) q_sample coefs + time bias
                     wc_ref, wx_ref,                  # VMEM: (NS,R,1) per-shift weight columns
                     xs_ref, cond_ref, nz_ref,        # VMEM: (R, HW_tile) image tiles
                     loss_ref,                        # SMEM out: (1,1)
                     acc_ref,                         # VMEM scratch: (R, HW_tile) f32
                     *, shifts, inv_n):
    j = pl.program_id(0)

    @pl.when(j == 0)
    def _():
        acc_ref[...] = jnp.zeros_like(acc_ref)

    R, hw_t = nz_ref.shape
    xs = xs_ref[...].astype(jnp.float32)
    cond = cond_ref[...].astype(jnp.float32)
    nz = nz_ref[...].astype(jnp.float32)

    # q_sample on the full (R, hw_t) tile (all 8 sublanes busy).
    xn = acol_ref[...] * xs + scol_ref[...] * nz

    # Stand-in denoise_fn: per-batch 1x1 conv over concat([cond, x_noisy]) channels
    # + a per-channel time bias.  Channel mixing = (2C-1) full-tile sublane rolls
    # (XLU) combined with (R,1) weight columns (VPU); the columns are zero on rows
    # where the roll would pull data across the batch boundary.
    recon = jnp.zeros((R, hw_t), jnp.float32) + bias_ref[...]
    for si, k in enumerate(shifts):
        kk = k % R
        if kk == 0:
            cond_s, xn_s = cond, xn
        else:
            cond_s = pltpu.roll(cond, shift=kk, axis=0)
            xn_s = pltpu.roll(xn, shift=kk, axis=0)
        recon = recon + wc_ref[si] * cond_s + wx_ref[si] * xn_s

    # Full-tile |noise - recon| into the persistent vector accumulator.
    acc_ref[...] += jnp.abs(nz - recon)

    @pl.when(j == pl.num_programs(0) - 1)
    def _():
        loss_ref[0, 0] = jnp.sum(acc_ref[...]) * jnp.float32(inv_n)


def _pick_hw_tile(hw):
    # Lane-dense tiles (multiples of 128); prefer >= 2 grid steps so the auto
    # pipeline can overlap DMA and compute; cap the per-step tile at 2048 lanes.
    for cand in (2048, 1024, 512, 256, 128):
        if hw % cand == 0 and hw >= 2 * cand:
            return cand
    return hw


def gaussian_diffusion_p_losses(x_hr, x_sr, t, noise,
                                sqrt_ac, sqrt_1mac,
                                w_cond, w_x, w_t):
    """Pallas implementation of GaussianDiffusion.forward (= p_losses)."""
    B, C, H, W = x_hr.shape
    HW = H * W
    R = B * C
    NS = 2 * C - 1
    shifts = tuple(range(-(C - 1), C))

    # Layout plumbing only: fold batch into the sublane dim -> (B*C, HW).
    # Keep the original dtype through the DMA; upcast happens inside the kernel.
    xs = x_hr.reshape(R, HW)
    cond = x_sr.reshape(R, HW)
    nz = noise.reshape(R, HW)

    tf = t.astype(jnp.float32)
    a = sqrt_ac[t].astype(jnp.float32)        # (B,) sqrt_alphas_cumprod[t]
    s = sqrt_1mac[t].astype(jnp.float32)      # (B,) sqrt_one_minus_alphas_cumprod[t]
    acol = jnp.repeat(a, C).reshape(R, 1)
    scol = jnp.repeat(s, C).reshape(R, 1)

    o_idx = jnp.arange(R, dtype=jnp.int32) % C            # output channel of each row
    bias_col = (w_t.reshape(C)[o_idx] * jnp.repeat(tf, C)).reshape(R, 1).astype(jnp.float32)

    def shift_cols(w):
        # (C, C) weights -> (NS, R, 1) per-shift weight columns; zero where the
        # corresponding full-tile roll would wrap rows across the batch boundary.
        cols = []
        for k in shifts:
            src = o_idx - k                                # source channel for this shift
            valid = (src >= 0) & (src < C)
            col = jnp.where(valid, w[o_idx, jnp.clip(src, 0, C - 1)], 0.0)
            cols.append(col)
        return jnp.stack(cols, axis=0).reshape(NS, R, 1).astype(jnp.float32)

    wc_cols = shift_cols(w_cond)
    wx_cols = shift_cols(w_x)

    hw_tile = _pick_hw_tile(HW)
    n_steps = HW // hw_tile

    kernel = functools.partial(_p_losses_kernel, shifts=shifts,
                               inv_n=1.0 / (B * C * HW))

    # 3 image streams x 2 pipeline buffers + f32 accumulator scratch, plus slack.
    tile_bytes = R * hw_tile * np.dtype(x_hr.dtype).itemsize
    vmem_limit = int(min(max(8 * tile_bytes + (2 << 20), 4 << 20), 48 << 20))

    col_spec = pl.BlockSpec((R, 1), lambda j: (0, 0))
    w_spec = pl.BlockSpec((NS, R, 1), lambda j: (0, 0, 0))
    img_spec = pl.BlockSpec((R, hw_tile), lambda j: (0, j))

    loss = pl.pallas_call(
        kernel,
        out_shape=jax.ShapeDtypeStruct((1, 1), jnp.float32),
        grid_spec=pltpu.PrefetchScalarGridSpec(
            num_scalar_prefetch=0,
            grid=(n_steps,),
            in_specs=[col_spec, col_spec, col_spec,        # acol, scol, bias
                      w_spec, w_spec,                      # wc_cols, wx_cols
                      img_spec, img_spec, img_spec],       # xs (HR), cond (SR), noise
            out_specs=pl.BlockSpec(memory_space=pltpu.MemorySpace.SMEM),
            scratch_shapes=[pltpu.VMEM((R, hw_tile), jnp.float32)],
        ),
        compiler_params=pltpu.CompilerParams(
            dimension_semantics=("arbitrary",),            # loss accumulation axis
            vmem_limit_bytes=vmem_limit,
        ),
    )(acol, scol, bias_col, wc_cols, wx_cols, xs, cond, nz)
    return loss[0, 0]


def reference_p_losses(x_hr, x_sr, t, noise, sqrt_ac, sqrt_1mac, w_cond, w_x, w_t):
    """Pure-JAX reference (mirrors the PyTorch semantics with the same stand-in denoiser)."""
    a = sqrt_ac[t][:, None, None, None]
    s = sqrt_1mac[t][:, None, None, None]
    x_noisy = a * x_hr + s * noise
    recon = (
        jnp.einsum("oc,bchw->bohw", w_cond, x_sr)
        + jnp.einsum("oc,bchw->bohw", w_x, x_noisy)
        + w_t[None, :, 0, None, None] * t.astype(jnp.float32)[:, None, None, None]
    )
    return jnp.mean(jnp.abs(noise - recon))


if __name__ == "__main__":
    B, C, H, W = 2, 4, 16, 16
    n_timestep = 32
    linear_start, linear_end = 1e-4, 2e-2

    # noise schedule buffers (set_new_noise_schedule, linear schedule)
    betas = np.linspace(linear_start, linear_end, n_timestep, dtype=np.float64)
    alphas = 1.0 - betas
    alphas_cumprod = np.cumprod(alphas, axis=0)
    sqrt_ac = jnp.asarray(np.sqrt(alphas_cumprod), dtype=jnp.float32)
    sqrt_1mac = jnp.asarray(np.sqrt(1.0 - alphas_cumprod), dtype=jnp.float32)

    key = jax.random.PRNGKey(0)
    k_hr, k_sr, k_t, k_noise, k_wc, k_wx, k_wt = jax.random.split(key, 7)

    x_hr = jax.random.normal(k_hr, (B, C, H, W), dtype=jnp.float32)     # x_in['HR']
    x_sr = jax.random.normal(k_sr, (B, C, H, W), dtype=jnp.float32)     # x_in['SR']
    t = jax.random.randint(k_t, (B,), 0, n_timestep, dtype=jnp.int32)
    noise = jax.random.normal(k_noise, (B, C, H, W), dtype=jnp.float32)

    # deterministic stand-in denoise_fn weights (1x1 conv over 2C channels + time bias)
    w_cond = 0.1 * jax.random.normal(k_wc, (C, C), dtype=jnp.float32)
    w_x = 0.1 * jax.random.normal(k_wx, (C, C), dtype=jnp.float32)
    w_t = 0.01 * jax.random.normal(k_wt, (C, 1), dtype=jnp.float32)

    loss = gaussian_diffusion_p_losses(
        x_hr, x_sr, t, noise, sqrt_ac, sqrt_1mac, w_cond, w_x, w_t)
    loss = jax.block_until_ready(loss)

    ref = reference_p_losses(
        x_hr, x_sr, t, noise, sqrt_ac, sqrt_1mac, w_cond, w_x, w_t)
    ref = jax.block_until_ready(ref)

    assert jnp.allclose(loss, ref, rtol=1e-4, atol=1e-5), (loss, ref)
    print("KERNEL_OK")
</pallas_src>

<mosaic_0001>
module attributes {stable_mosaic.version = 11 : i64} {
  func.func @_p_losses_kernel(%arg0: i32, %arg1: memref<8x1xf32, #tpu.memory_space<vmem>>, %arg2: memref<8x1xf32, #tpu.memory_space<vmem>>, %arg3: memref<8x1xf32, #tpu.memory_space<vmem>>, %arg4: memref<7x8x1xf32, #tpu.memory_space<vmem>>, %arg5: memref<7x8x1xf32, #tpu.memory_space<vmem>>, %arg6: memref<8x128xf32, #tpu.memory_space<vmem>>, %arg7: memref<8x128xf32, #tpu.memory_space<vmem>>, %arg8: memref<8x128xf32, #tpu.memory_space<vmem>>, %arg9: memref<1x1xf32, #tpu.memory_space<smem>>, %arg10: memref<8x128xf32, #tpu.memory_space<vmem>>) attributes {dimension_semantics = [#tpu.dimension_semantics<arbitrary>], iteration_bounds = array<i64: 2>, scalar_prefetch = 0 : i64, scratch_operands = 1 : i64, tpu.core_type = #tpu.core_type<tc>, window_params = [{pipeline_mode = #tpu.pipeline_mode<synchronous>, transform_indices = @transform_0, window_bounds = array<i64: 8, 1>}, {pipeline_mode = #tpu.pipeline_mode<synchronous>, transform_indices = @transform_1, window_bounds = array<i64: 8, 1>}, {pipeline_mode = #tpu.pipeline_mode<synchronous>, transform_indices = @transform_2, window_bounds = array<i64: 8, 1>}, {pipeline_mode = #tpu.pipeline_mode<synchronous>, transform_indices = @transform_3, window_bounds = array<i64: 7, 8, 1>}, {pipeline_mode = #tpu.pipeline_mode<synchronous>, transform_indices = @transform_4, window_bounds = array<i64: 7, 8, 1>}, {transform_indices = @transform_5, window_bounds = array<i64: 8, 128>}, {transform_indices = @transform_6, window_bounds = array<i64: 8, 128>}, {transform_indices = @transform_7, window_bounds = array<i64: 8, 128>}, {transform_indices = @transform_8, window_bounds = array<i64: 1, 1>}]} {
    %c0_i32 = arith.constant 0 : i32
    %0 = arith.cmpi eq, %arg0, %c0_i32 : i32
    %1 = arith.extui %0 : i1 to i32
    %c0_i32_0 = arith.constant 0 : i32
    %2 = arith.cmpi ne, %1, %c0_i32_0 : i32
    scf.if %2 {
      %cst_60 = arith.constant 0.000000e+00 : f32
      %107 = vector.broadcast %cst_60 : f32 to vector<8x128xf32>
      %c0_61 = arith.constant 0 : index
      %c0_62 = arith.constant 0 : index
      %108 = vector.load %arg10[%c0_61, %c0_62] : memref<8x128xf32, #tpu.memory_space<vmem>>, vector<8x128xf32>
      tpu.vector_store %arg10[%c0_61, %c0_62], %107 {strides = array<i32>} : memref<8x128xf32, #tpu.memory_space<vmem>>, vector<8x128xf32>,
    } else {
    }
    %c0 = arith.constant 0 : index
    %c0_1 = arith.constant 0 : index
    %3 = vector.load %arg6[%c0, %c0_1] : memref<8x128xf32, #tpu.memory_space<vmem>>, vector<8x128xf32>
    %c0_2 = arith.constant 0 : index
    %c0_3 = arith.constant 0 : index
    %4 = vector.load %arg7[%c0_2, %c0_3] : memref<8x128xf32, #tpu.memory_space<vmem>>, vector<8x128xf32>
    %c0_4 = arith.constant 0 : index
    %c0_5 = arith.constant 0 : index
    %5 = vector.load %arg8[%c0_4, %c0_5] : memref<8x128xf32, #tpu.memory_space<vmem>>, vector<8x128xf32>
    %c0_6 = arith.constant 0 : index
    %c0_7 = arith.constant 0 : index
    %6 = vector.load %arg1[%c0_6, %c0_7] : memref<8x1xf32, #tpu.memory_space<vmem>>, vector<8x1xf32>
    %7 = vector.broadcast %6 : vector<8x1xf32> to vector<8x128xf32>
    %8 = arith.mulf %7, %3 : vector<8x128xf32>
    %c0_8 = arith.constant 0 : index
    %c0_9 = arith.constant 0 : index
    %9 = vector.load %arg2[%c0_8, %c0_9] : memref<8x1xf32, #tpu.memory_space<vmem>>, vector<8x1xf32>
    %10 = vector.broadcast %9 : vector<8x1xf32> to vector<8x128xf32>
    %11 = arith.mulf %10, %5 : vector<8x128xf32>
    %12 = arith.addf %8, %11 : vector<8x128xf32>
    %cst = arith.constant 0.000000e+00 : f32
    %13 = vector.broadcast %cst : f32 to vector<8x128xf32>
    %c0_10 = arith.constant 0 : index
    %c0_11 = arith.constant 0 : index
    %14 = vector.load %arg3[%c0_10, %c0_11] : memref<8x1xf32, #tpu.memory_space<vmem>>, vector<8x1xf32>
    %15 = vector.broadcast %14 : vector<8x1xf32> to vector<8x128xf32>
    %16 = arith.addf %13, %15 : vector<8x128xf32>
    %c5_i32 = arith.constant 5 : i32
    %17 = tpu.dynamic_rotate %4 by %c5_i32 dim 0 : vector<8x128xf32>, i32 -> vector<8x128xf32>
    %c5_i32_12 = arith.constant 5 : i32
    %18 = tpu.dynamic_rotate %12 by %c5_i32_12 dim 0 : vector<8x128xf32>, i32 -> vector<8x128xf32>
    %c0_13 = arith.constant 0 : index
    %c0_14 = arith.constant 0 : index
    %c0_15 = arith.constant 0 : index
    %19 = vector.load %arg4[%c0_13, %c0_14, %c0_15] : memref<7x8x1xf32, #tpu.memory_space<vmem>>, vector<1x8x1xf32>
    %20 = vector.shape_cast %19 : vector<1x8x1xf32> to vector<8x1xf32>
    %21 = vector.broadcast %20 : vector<8x1xf32> to vector<8x128xf32>
    %22 = arith.mulf %21, %17 : vector<8x128xf32>
    %23 = arith.addf %16, %22 : vector<8x128xf32>
    %c0_16 = arith.constant 0 : index
    %c0_17 = arith.constant 0 : index
    %c0_18 = arith.constant 0 : index
    %24 = vector.load %arg5[%c0_16, %c0_17, %c0_18] : memref<7x8x1xf32, #tpu.memory_space<vmem>>, vector<1x8x1xf32>
    %25 = vector.shape_cast %24 : vector<1x8x1xf32> to vector<8x1xf32>
    %26 = vector.broadcast %25 : vector<8x1xf32> to vector<8x128xf32>
    %27 = arith.mulf %26, %18 : vector<8x128xf32>
    %28 = arith.addf %23, %27 : vector<8x128xf32>
    %c6_i32 = arith.constant 6 : i32
    %29 = tpu.dynamic_rotate %4 by %c6_i32 dim 0 : vector<8x128xf32>, i32 -> vector<8x128xf32>
    %c6_i32_19 = arith.constant 6 : i32
    %30 = tpu.dynamic_rotate %12 by %c6_i32_19 dim 0 : vector<8x128xf32>, i32 -> vector<8x128xf32>
    %c1 = arith.constant 1 : index
    %c0_20 = arith.constant 0 : index
    %c0_21 = arith.constant 0 : index
    %31 = vector.load %arg4[%c1, %c0_20, %c0_21] : memref<7x8x1xf32, #tpu.memory_space<vmem>>, vector<1x8x1xf32>
    %32 = vector.shape_cast %31 : vector<1x8x1xf32> to vector<8x1xf32>
    %33 = vector.broadcast %32 : vector<8x1xf32> to vector<8x128xf32>
    %34 = arith.mulf %33, %29 : vector<8x128xf32>
    %35 = arith.addf %28, %34 : vector<8x128xf32>
    %c1_22 = arith.constant 1 : index
    %c0_23 = arith.constant 0 : index
    %c0_24 = arith.constant 0 : index
    %36 = vector.load %arg5[%c1_22, %c0_23, %c0_24] : memref<7x8x1xf32, #tpu.memory_space<vmem>>, vector<1x8x1xf32>
    %37 = vector.shape_cast %36 : vector<1x8x1xf32> to vector<8x1xf32>
    %38 = vector.broadcast %37 : vector<8x1xf32> to vector<8x128xf32>
    %39 = arith.mulf %38, %30 : vector<8x128xf32>
    %40 = arith.addf %35, %39 : vector<8x128xf32>
    %c7_i32 = arith.constant 7 : i32
    %41 = tpu.dynamic_rotate %4 by %c7_i32 dim 0 : vector<8x128xf32>, i32 -> vector<8x128xf32>
    %c7_i32_25 = arith.constant 7 : i32
    %42 = tpu.dynamic_rotate %12 by %c7_i32_25 dim 0 : vector<8x128xf32>, i32 -> vector<8x128xf32>
    %c2 = arith.constant 2 : index
    %c0_26 = arith.constant 0 : index
    %c0_27 = arith.constant 0 : index
    %43 = vector.load %arg4[%c2, %c0_26, %c0_27] : memref<7x8x1xf32, #tpu.memory_space<vmem>>, vector<1x8x1xf32>
    %44 = vector.shape_cast %43 : vector<1x8x1xf32> to vector<8x1xf32>
    %45 = vector.broadcast %44 : vector<8x1xf32> to vector<8x128xf32>
    %46 = arith.mulf %45, %41 : vector<8x128xf32>
    %47 = arith.addf %40, %46 : vector<8x128xf32>
    %c2_28 = arith.constant 2 : index
    %c0_29 = arith.constant 0 : index
    %c0_30 = arith.constant 0 : index
    %48 = vector.load %arg5[%c2_28, %c0_29, %c0_30] : memref<7x8x1xf32, #tpu.memory_space<vmem>>, vector<1x8x1xf32>
    %49 = vector.shape_cast %48 : vector<1x8x1xf32> to vector<8x1xf32>
    %50 = vector.broadcast %49 : vector<8x1xf32> to vector<8x128xf32>
    %51 = arith.mulf %50, %42 : vector<8x128xf32>
    %52 = arith.addf %47, %51 : vector<8x128xf32>
    %c3 = arith.constant 3 : index
    %c0_31 = arith.constant 0 : index
    %c0_32 = arith.constant 0 : index
    %53 = vector.load %arg4[%c3, %c0_31, %c0_32] : memref<7x8x1xf32, #tpu.memory_space<vmem>>, vector<1x8x1xf32>
    %54 = vector.shape_cast %53 : vector<1x8x1xf32> to vector<8x1xf32>
    %55 = vector.broadcast %54 : vector<8x1xf32> to vector<8x128xf32>
    %56 = arith.mulf %55, %4 : vector<8x128xf32>
    %57 = arith.addf %52, %56 : vector<8x128xf32>
    %c3_33 = arith.constant 3 : index
    %c0_34 = arith.constant 0 : index
    %c0_35 = arith.constant 0 : index
    %58 = vector.load %arg5[%c3_33, %c0_34, %c0_35] : memref<7x8x1xf32, #tpu.memory_space<vmem>>, vector<1x8x1xf32>
    %59 = vector.shape_cast %58 : vector<1x8x1xf32> to vector<8x1xf32>
    %60 = vector.broadcast %59 : vector<8x1xf32> to vector<8x128xf32>
    %61 = arith.mulf %60, %12 : vector<8x128xf32>
    %62 = arith.addf %57, %61 : vector<8x128xf32>
    %c1_i32 = arith.constant 1 : i32
    %63 = tpu.dynamic_rotate %4 by %c1_i32 dim 0 : vector<8x128xf32>, i32 -> vector<8x128xf32>
    %c1_i32_36 = arith.constant 1 : i32
    %64 = tpu.dynamic_rotate %12 by %c1_i32_36 dim 0 : vector<8x128xf32>, i32 -> vector<8x128xf32>
    %c4 = arith.constant 4 : index
    %c0_37 = arith.constant 0 : index
    %c0_38 = arith.constant 0 : index
    %65 = vector.load %arg4[%c4, %c0_37, %c0_38] : memref<7x8x1xf32, #tpu.memory_space<vmem>>, vector<1x8x1xf32>
    %66 = vector.shape_cast %65 : vector<1x8x1xf32> to vector<8x1xf32>
    %67 = vector.broadcast %66 : vector<8x1xf32> to vector<8x128xf32>
    %68 = arith.mulf %67, %63 : vector<8x128xf32>
    %69 = arith.addf %62, %68 : vector<8x128xf32>
    %c4_39 = arith.constant 4 : index
    %c0_40 = arith.constant 0 : index
    %c0_41 = arith.constant 0 : index
    %70 = vector.load %arg5[%c4_39, %c0_40, %c0_41] : memref<7x8x1xf32, #tpu.memory_space<vmem>>, vector<1x8x1xf32>
    %71 = vector.shape_cast %70 : vector<1x8x1xf32> to vector<8x1xf32>
    %72 = vector.broadcast %71 : vector<8x1xf32> to vector<8x128xf32>
    %73 = arith.mulf %72, %64 : vector<8x128xf32>
    %74 = arith.addf %69, %73 : vector<8x128xf32>
    %c2_i32 = arith.constant 2 : i32
    %75 = tpu.dynamic_rotate %4 by %c2_i32 dim 0 : vector<8x128xf32>, i32 -> vector<8x128xf32>
    %c2_i32_42 = arith.constant 2 : i32
    %76 = tpu.dynamic_rotate %12 by %c2_i32_42 dim 0 : vector<8x128xf32>, i32 -> vector<8x128xf32>
    %c5 = arith.constant 5 : index
    %c0_43 = arith.constant 0 : index
    %c0_44 = arith.constant 0 : index
    %77 = vector.load %arg4[%c5, %c0_43, %c0_44] : memref<7x8x1xf32, #tpu.memory_space<vmem>>, vector<1x8x1xf32>
    %78 = vector.shape_cast %77 : vector<1x8x1xf32> to vector<8x1xf32>
    %79 = vector.broadcast %78 : vector<8x1xf32> to vector<8x128xf32>
    %80 = arith.mulf %79, %75 : vector<8x128xf32>
    %81 = arith.addf %74, %80 : vector<8x128xf32>
    %c5_45 = arith.constant 5 : index
    %c0_46 = arith.constant 0 : index
    %c0_47 = arith.constant 0 : index
    %82 = vector.load %arg5[%c5_45, %c0_46, %c0_47] : memref<7x8x1xf32, #tpu.memory_space<vmem>>, vector<1x8x1xf32>
    %83 = vector.shape_cast %82 : vector<1x8x1xf32> to vector<8x1xf32>
    %84 = vector.broadcast %83 : vector<8x1xf32> to vector<8x128xf32>
    %85 = arith.mulf %84, %76 : vector<8x128xf32>
    %86 = arith.addf %81, %85 : vector<8x128xf32>
    %c3_i32 = arith.constant 3 : i32
    %87 = tpu.dynamic_rotate %4 by %c3_i32 dim 0 : vector<8x128xf32>, i32 -> vector<8x128xf32>
    %c3_i32_48 = arith.constant 3 : i32
    %88 = tpu.dynamic_rotate %12 by %c3_i32_48 dim 0 : vector<8x128xf32>, i32 -> vector<8x128xf32>
    %c6 = arith.constant 6 : index
    %c0_49 = arith.constant 0 : index
    %c0_50 = arith.constant 0 : index
    %89 = vector.load %arg4[%c6, %c0_49, %c0_50] : memref<7x8x1xf32, #tpu.memory_space<vmem>>, vector<1x8x1xf32>
    %90 = vector.shape_cast %89 : vector<1x8x1xf32> to vector<8x1xf32>
    %91 = vector.broadcast %90 : vector<8x1xf32> to vector<8x128xf32>
    %92 = arith.mulf %91, %87 : vector<8x128xf32>
    %93 = arith.addf %86, %92 : vector<8x128xf32>
    %c6_51 = arith.constant 6 : index
    %c0_52 = arith.constant 0 : index
    %c0_53 = arith.constant 0 : index
    %94 = vector.load %arg5[%c6_51, %c0_52, %c0_53] : memref<7x8x1xf32, #tpu.memory_space<vmem>>, vector<1x8x1xf32>
    %95 = vector.shape_cast %94 : vector<1x8x1xf32> to vector<8x1xf32>
    %96 = vector.broadcast %95 : vector<8x1xf32> to vector<8x128xf32>
    %97 = arith.mulf %96, %88 : vector<8x128xf32>
    %98 = arith.addf %93, %97 : vector<8x128xf32>
    %c0_54 = arith.constant 0 : index
    %c0_55 = arith.constant 0 : index
    %99 = vector.load %arg10[%c0_54, %c0_55] : memref<8x128xf32, #tpu.memory_space<vmem>>, vector<8x128xf32>
    %100 = arith.subf %5, %98 : vector<8x128xf32>
    %101 = math.absf %100 : vector<8x128xf32>
    %102 = arith.addf %99, %101 : vector<8x128xf32>
    %c0_56 = arith.constant 0 : index
    %c0_57 = arith.constant 0 : index
    %103 = vector.load %arg10[%c0_56, %c0_57] : memref<8x128xf32, #tpu.memory_space<vmem>>, vector<8x128xf32>
    tpu.vector_store %arg10[%c0_56, %c0_57], %102 {strides = array<i32>} : memref<8x128xf32, #tpu.memory_space<vmem>>, vector<8x128xf32>,
    %c1_i32_58 = arith.constant 1 : i32
    %104 = arith.cmpi eq, %arg0, %c1_i32_58 : i32
    %105 = arith.extui %104 : i1 to i32
    %c0_i32_59 = arith.constant 0 : i32
    %106 = arith.cmpi ne, %105, %c0_i32_59 : i32
    scf.if %106 {
      %c0_60 = arith.constant 0 : index
      %c0_61 = arith.constant 0 : index
      %107 = vector.load %arg10[%c0_60, %c0_61] : memref<8x128xf32, #tpu.memory_space<vmem>>, vector<8x128xf32>
      %108 = vector.shape_cast %107 : vector<8x128xf32> to vector<1x8x128xf32>
      %cst_62 = arith.constant dense<0.000000e+00> : vector<1xf32>
      %109 = vector.multi_reduction <add>, %108, %cst_62 [1, 2] : vector<1x8x128xf32> to vector<1xf32>
      %110 = vector.shape_cast %109 : vector<1xf32> to vector<1x1x1xf32>
      %111 = vector.extract %110[0, 0, 0] : f32 from vector<1x1x1xf32>
      %cst_63 = arith.constant 4.8828125E-4 : f32
      %112 = arith.mulf %111, %cst_63 : f32
      %c0_64 = arith.constant 0 : index
      %c0_65 = arith.constant 0 : index
      %113 = memref.load %arg9[%c0_64, %c0_65] : memref<1x1xf32, #tpu.memory_space<smem>>
      memref.store %112, %arg9[%c0_64, %c0_65] : memref<1x1xf32, #tpu.memory_space<smem>>
    } else {
    }
    return
  }
  func.func @transform_0(%arg0: i32) -> (i32, i32) {
    %c0_i32 = arith.constant 0 : i32
    %c0_i32_0 = arith.constant 0 : i32
    %c0_i32_1 = arith.constant 0 : i32
    return %c0_i32, %c0_i32_0 : i32, i32
  }
  func.func @transform_1(%arg0: i32) -> (i32, i32) {
    %c0_i32 = arith.constant 0 : i32
    %c0_i32_0 = arith.constant 0 : i32
    %c0_i32_1 = arith.constant 0 : i32
    return %c0_i32, %c0_i32_0 : i32, i32
  }
  func.func @transform_2(%arg0: i32) -> (i32, i32) {
    %c0_i32 = arith.constant 0 : i32
    %c0_i32_0 = arith.constant 0 : i32
    %c0_i32_1 = arith.constant 0 : i32
    return %c0_i32, %c0_i32_0 : i32, i32
  }
  func.func @transform_3(%arg0: i32) -> (i32, i32, i32) {
    %c0_i32 = arith.constant 0 : i32
    %c0_i32_0 = arith.constant 0 : i32
    %c0_i32_1 = arith.constant 0 : i32
    %c0_i32_2 = arith.constant 0 : i32
    return %c0_i32, %c0_i32_0, %c0_i32_1 : i32, i32, i32
  }
  func.func @transform_4(%arg0: i32) -> (i32, i32, i32) {
    %c0_i32 = arith.constant 0 : i32
    %c0_i32_0 = arith.constant 0 : i32
    %c0_i32_1 = arith.constant 0 : i32
    %c0_i32_2 = arith.constant 0 : i32
    return %c0_i32, %c0_i32_0, %c0_i32_1 : i32, i32, i32
  }
  func.func @transform_5(%arg0: i32) -> (i32, i32) {
    %c0_i32 = arith.constant 0 : i32
    %c0_i32_0 = arith.constant 0 : i32
    return %c0_i32, %arg0 : i32, i32
  }
  func.func @transform_6(%arg0: i32) -> (i32, i32) {
    %c0_i32 = arith.constant 0 : i32
    %c0_i32_0 = arith.constant 0 : i32
    return %c0_i32, %arg0 : i32, i32
  }
  func.func @transform_7(%arg0: i32) -> (i32, i32) {
    %c0_i32 = arith.constant 0 : i32
    %c0_i32_0 = arith.constant 0 : i32
    return %c0_i32, %arg0 : i32, i32
  }
  func.func @transform_8(%arg0: i32) -> (i32, i32) {
    %c0_i32 = arith.constant 0 : i32
    %c0_i32_0 = arith.constant 0 : i32
    %c0_i32_1 = arith.constant 0 : i32
    return %c0_i32, %c0_i32_0 : i32, i32
  }
}

</mosaic_0001>

<llo_original>
// kernel: tpu_custom_call.1
$region0: #{tpu_custom_call.1}
  #allocation0 [shape = 'u32[]', space=smem, size = 0x4, offset = 0x4, fixed_abs, tag = 'smem constant byte address 0x4 - core index']
  #allocation1 [shape = 'u32[144,128]{1,0:T(1,128)}', space=vmem, size = 0x12000, scoped, tag = 'internal scratch']
  #allocation2 [shape = 'f32[8,128]{1,0:T(8,128)}', space=vmem, size = 0x1000, scoped, tag = 'scratch operand']
  %s0 = inlined_call_operand.vmem [shape: f32[8,1], index: 0, kind: input, shape index: {}]
  %s1 = inlined_call_operand.vmem [shape: f32[8,1], index: 1, kind: input, shape index: {}]
  %s2 = inlined_call_operand.vmem [shape: f32[8,1], index: 2, kind: input, shape index: {}]
  %s3 = inlined_call_operand.vmem [shape: f32[7,8,1], index: 3, kind: input, shape index: {}]
  %s4 = inlined_call_operand.vmem [shape: f32[7,8,1], index: 4, kind: input, shape index: {}]
  %s5 = inlined_call_operand.vmem [shape: f32[8,256], index: 5, kind: input, shape index: {}]
  %s6 = inlined_call_operand.vmem [shape: f32[8,256], index: 6, kind: input, shape index: {}]
  %s7 = inlined_call_operand.vmem [shape: f32[8,256], index: 7, kind: input, shape index: {}]
  %s8 = inlined_call_operand.hbm [shape: f32[1,1], index: 8, kind: output, shape index: {}]
  %s9 = sld [smem:[#allocation0]]
  $region73: #{tpu_custom_call.1} parent=0
    _
  %s11 = ssub.s32 1, %s9
  %s12 = scalar_select 0, %s11, %s9
  $region1: #{tpu_custom_call.1} parent=0
    #allocation3 [shape = 'u8[512]{0}', space=smem, size = 0x200, scoped, tag = 'output window, operand 0, single buffered']
    #allocation4 [shape = 's32[2]{0}', space=sflag, size = 0x8, scoped, tag = 'scoped memory for tpu_custom_call.1']
    %13 = vsyncpa [#allocation4], 0
    loop: start=0, step=1, limit=4
    $region2: #{tpu_custom_call.1} parent=1 // loop_pre_header
      _
    $region3: #{tpu_custom_call.1} parent=1 // loop_header
      %s15 = sphi 0, %s19
      %p16 = scmp.ge.s32.totalorder %s15, 4
      %s23 = sphi 0, %s23
      %s25 = sphi 0, %s23
      %s26 = sphi 0, %s25
      %s40 = sphi 0, %s26
      %s44 = sphi 0, %s44
      %s46 = sphi 0, %s44
      %s47 = sphi 0, %s46
      %s61 = sphi 0, %s47
      %s65 = sphi 0, %s65
      %s67 = sphi 0, %s65
      %s68 = sphi 0, %s67
      %s82 = sphi 0, %s68
      %s86 = sphi 0, %s86
      %s88 = sphi 0, %s86
      %s89 = sphi 0, %s88
      %s103 = sphi 0, %s89
      %s107 = sphi 0, %s107
      %s109 = sphi 0, %s107
      %s110 = sphi 0, %s109
      %s124 = sphi 0, %s110
      %s130 = sphi 0, %s132
      %s133 = sphi 0, %s130
      %s134 = sphi 0, %s133
      %s150 = sphi 0, %s134
      %s156 = sphi 0, %s158
      %s159 = sphi 0, %s156
      %s160 = sphi 0, %s159
      %s176 = sphi 0, %s160
      %s182 = sphi 0, %s184
      %s185 = sphi 0, %s182
      %s186 = sphi 0, %s185
      %s202 = sphi 0, %s186
      %s206 = sphi 0, %s206
      %s208 = sphi 0, %s206
      %s209 = sphi 0, %s208
      %s223 = sphi 0, %s209
    $region4: #{tpu_custom_call.1} parent=1 // loop_header_branch
      %18 = sbr.rel (%p16) target = $region8
    $region5: #{tpu_custom_call.1} parent=1 // loop_body
      %s20 = ssub.s32 %s15, 1
      %s21 = ssub.s32 %s15, 2
      %s22 = sadd.s32 %s15, 1
      %s24 = sadd.s32 %s23, 1
      %p27 = scmp.eq.s32.totalorder %s15, 1
      %p28 = scmp.ne.s32.totalorder %s23, %s25
      %p29 = scmp.eq.s32.totalorder %s15, 0
      %p30 = por %p28, %p29
      %p31 = scmp.ne.s32.totalorder %s23, %s25
      %p32 = scmp.eq.s32.totalorder %s20, 1
      %p33 = por %p31, %p32
      %p34 = scmp.ne.s32.totalorder %s25, %s26
      %p35 = scmp.eq.s32.totalorder %s20, 0
      %p36 = por %p34, %p35
      %p37 = scmp.ne.s32.totalorder %s25, %s26
      %p38 = scmp.eq.s32.totalorder %s21, 1
      %p39 = por %p37, %p38
      %p41 = scmp.ne.s32.totalorder %s26, %s40
      %p42 = scmp.eq.s32.totalorder %s21, 0
      %p43 = por %p41, %p42
      %s45 = sadd.s32 %s44, 1
      %p48 = scmp.eq.s32.totalorder %s15, 1
      %p49 = scmp.ne.s32.totalorder %s44, %s46
      %p50 = scmp.eq.s32.totalorder %s15, 0
      %p51 = por %p49, %p50
      %p52 = scmp.ne.s32.totalorder %s44, %s46
      %p53 = scmp.eq.s32.totalorder %s20, 1
      %p54 = por %p52, %p53
      %p55 = scmp.ne.s32.totalorder %s46, %s47
      %p56 = scmp.eq.s32.totalorder %s20, 0
      %p57 = por %p55, %p56
      %p58 = scmp.ne.s32.totalorder %s46, %s47
      %p59 = scmp.eq.s32.totalorder %s21, 1
      %p60 = por %p58, %p59
      %p62 = scmp.ne.s32.totalorder %s47, %s61
      %p63 = scmp.eq.s32.totalorder %s21, 0
      %p64 = por %p62, %p63
      %s66 = sadd.s32 %s65, 1
      %p69 = scmp.eq.s32.totalorder %s15, 1
      %p70 = scmp.ne.s32.totalorder %s65, %s67
      %p71 = scmp.eq.s32.totalorder %s15, 0
      %p72 = por %p70, %p71
      %p73 = scmp.ne.s32.totalorder %s65, %s67
      %p74 = scmp.eq.s32.totalorder %s20, 1
      %p75 = por %p73, %p74
      %p76 = scmp.ne.s32.totalorder %s67, %s68
      %p77 = scmp.eq.s32.totalorder %s20, 0
      %p78 = por %p76, %p77
      %p79 = scmp.ne.s32.totalorder %s67, %s68
      %p80 = scmp.eq.s32.totalorder %s21, 1
      %p81 = por %p79, %p80
      %p83 = scmp.ne.s32.totalorder %s68, %s82
      %p84 = scmp.eq.s32.totalorder %s21, 0
      %p85 = por %p83, %p84
      %s87 = sadd.s32 %s86, 1
      %p90 = scmp.eq.s32.totalorder %s15, 1
      %p91 = scmp.ne.s32.totalorder %s86, %s88
      %p92 = scmp.eq.s32.totalorder %s15, 0
      %p93 = por %p91, %p92
      %p94 = scmp.ne.s32.totalorder %s86, %s88
      %p95 = scmp.eq.s32.totalorder %s20, 1
      %p96 = por %p94, %p95
      %p97 = scmp.ne.s32.totalorder %s88, %s89
      %p98 = scmp.eq.s32.totalorder %s20, 0
      %p99 = por %p97, %p98
      %p100 = scmp.ne.s32.totalorder %s88, %s89
      %p101 = scmp.eq.s32.totalorder %s21, 1
      %p102 = por %p100, %p101
      %p104 = scmp.ne.s32.totalorder %s89, %s103
      %p105 = scmp.eq.s32.totalorder %s21, 0
      %p106 = por %p104, %p105
      %s108 = sadd.s32 %s107, 1
      %p111 = scmp.eq.s32.totalorder %s15, 1
      %p112 = scmp.ne.s32.totalorder %s107, %s109
      %p113 = scmp.eq.s32.totalorder %s15, 0
      %p114 = por %p112, %p113
      %p115 = scmp.ne.s32.totalorder %s107, %s109
      %p116 = scmp.eq.s32.totalorder %s20, 1
      %p117 = por %p115, %p116
      %p118 = scmp.ne.s32.totalorder %s109, %s110
      %p119 = scmp.eq.s32.totalorder %s20, 0
      %p120 = por %p118, %p119
      %p121 = scmp.ne.s32.totalorder %s109, %s110
      %p122 = scmp.eq.s32.totalorder %s21, 1
      %p123 = por %p121, %p122
      %p125 = scmp.ne.s32.totalorder %s110, %s124
      %p126 = scmp.eq.s32.totalorder %s21, 0
      %p127 = por %p125, %p126
      %s128 = ssub.s32 %s15, %s22
      %p129 = scmp.eq.s32.totalorder %s128, 0
      %s131 = sadd.s32 %s130, 1
      %s132 = scalar_select %p129, %s130, %s131
      %p135 = pneg %p129
      %p136 = scmp.eq.s32.totalorder %s15, 1
      %p137 = por %p135, %p136
      %p138 = scmp.ne.s32.totalorder %s130, %s133
      %p139 = scmp.eq.s32.totalorder %s15, 0
      %p140 = por %p138, %p139
      %p141 = scmp.ne.s32.totalorder %s130, %s133
      %p142 = scmp.eq.s32.totalorder %s20, 1
      %p143 = por %p141, %p142
      %p144 = scmp.ne.s32.totalorder %s133, %s134
      %p145 = scmp.eq.s32.totalorder %s20, 0
      %p146 = por %p144, %p145
      %p147 = scmp.ne.s32.totalorder %s133, %s134
      %p148 = scmp.eq.s32.totalorder %s21, 1
      %p149 = por %p147, %p148
      %p151 = scmp.ne.s32.totalorder %s134, %s150
      %p152 = scmp.eq.s32.totalorder %s21, 0
      %p153 = por %p151, %p152
      %s154 = ssub.s32 %s15, %s22
      %p155 = scmp.eq.s32.totalorder %s154, 0
      %s157 = sadd.s32 %s156, 1
      %s158 = scalar_select %p155, %s156, %s157
      %p161 = pneg %p155
      %p162 = scmp.eq.s32.totalorder %s15, 1
      %p163 = por %p161, %p162
      %p164 = scmp.ne.s32.totalorder %s156, %s159
      %p165 = scmp.eq.s32.totalorder %s15, 0
      %p166 = por %p164, %p165
      %p167 = scmp.ne.s32.totalorder %s156, %s159
      %p168 = scmp.eq.s32.totalorder %s20, 1
      %p169 = por %p167, %p168
      %p170 = scmp.ne.s32.totalorder %s159, %s160
      %p171 = scmp.eq.s32.totalorder %s20, 0
      %p172 = por %p170, %p171
      %p173 = scmp.ne.s32.totalorder %s159, %s160
      %p174 = scmp.eq.s32.totalorder %s21, 1
      %p175 = por %p173, %p174
      %p177 = scmp.ne.s32.totalorder %s160, %s176
      %p178 = scmp.eq.s32.totalorder %s21, 0
      %p179 = por %p177, %p178
      %s180 = ssub.s32 %s15, %s22
      %p181 = scmp.eq.s32.totalorder %s180, 0
      %s183 = sadd.s32 %s182, 1
      %s184 = scalar_select %p181, %s182, %s183
      %p187 = pneg %p181
      %p188 = scmp.eq.s32.totalorder %s15, 1
      %p189 = por %p187, %p188
      %p190 = scmp.ne.s32.totalorder %s182, %s185
      %p191 = scmp.eq.s32.totalorder %s15, 0
      %p192 = por %p190, %p191
      %p193 = scmp.ne.s32.totalorder %s182, %s185
      %p194 = scmp.eq.s32.totalorder %s20, 1
      %p195 = por %p193, %p194
      %p196 = scmp.ne.s32.totalorder %s185, %s186
      %p197 = scmp.eq.s32.totalorder %s20, 0
      %p198 = por %p196, %p197
      %p199 = scmp.ne.s32.totalorder %s185, %s186
      %p200 = scmp.eq.s32.totalorder %s21, 1
      %p201 = por %p199, %p200
      %p203 = scmp.ne.s32.totalorder %s186, %s202
      %p204 = scmp.eq.s32.totalorder %s21, 0
      %p205 = por %p203, %p204
      %s207 = sadd.s32 %s206, 1
      %p210 = scmp.eq.s32.totalorder %s15, 1
      %p211 = scmp.ne.s32.totalorder %s206, %s208
      %p212 = scmp.eq.s32.totalorder %s15, 0
      %p213 = por %p211, %p212
      %p214 = scmp.ne.s32.totalorder %s206, %s208
      %p215 = scmp.eq.s32.totalorder %s20, 1
      %p216 = por %p214, %p215
      %p217 = scmp.ne.s32.totalorder %s208, %s209
      %p218 = scmp.eq.s32.totalorder %s20, 0
      %p219 = por %p217, %p218
      %p220 = scmp.ne.s32.totalorder %s208, %s209
      %p221 = scmp.eq.s32.totalorder %s21, 1
      %p222 = por %p220, %p221
      %p224 = scmp.ne.s32.totalorder %s209, %s223
      %p225 = scmp.eq.s32.totalorder %s21, 0
      %p226 = por %p224, %p225
      %p227 = scmp.le.s32.totalorder 1, %s15
      %p228 = scmp.lt.s32.totalorder %s15, 3
      %p229 = pnand %p227, %p228
      %p230 = pneg %p229
      // Predicated region
      $region9: #{tpu_custom_call.1} parent=5 // pred_check
        _
      $region10: #{tpu_custom_call.1} parent=5 // pred_check_branch
        %232 = sbr.rel (%p229) target = $region12
      $region11: #{tpu_custom_call.1} parent=5 // pred_region
        %s233 = ssub.s32 %s15, 1
        // Predicated region
        $region13: #{tpu_custom_call.1} parent=11 // pred_check
          %p234 = pneg %p36
        $region14: #{tpu_custom_call.1} parent=11 // pred_check_branch
          %236 = sbr.rel (%p234) target = $region16
        $region15: #{tpu_custom_call.1} parent=11 // pred_region
          _
        $region16: #{tpu_custom_call.1} parent=11 // pred_fallthru
          _
        // Predicated region
        $region17: #{tpu_custom_call.1} parent=11 // pred_check
          %p237 = pneg %p57
        $region18: #{tpu_custom_call.1} parent=11 // pred_check_branch
          %239 = sbr.rel (%p237) target = $region20
        $region19: #{tpu_custom_call.1} parent=11 // pred_region
          _
        $region20: #{tpu_custom_call.1} parent=11 // pred_fallthru
          _
        // Predicated region
        $region21: #{tpu_custom_call.1} parent=11 // pred_check
          %p240 = pneg %p78
        $region22: #{tpu_custom_call.1} parent=11 // pred_check_branch
          %242 = sbr.rel (%p240) target = $region24
        $region23: #{tpu_custom_call.1} parent=11 // pred_region
          _
        $region24: #{tpu_custom_call.1} parent=11 // pred_fallthru
          _
        // Predicated region
        $region25: #{tpu_custom_call.1} parent=11 // pred_check
          %p243 = pneg %p99
        $region26: #{tpu_custom_call.1} parent=11 // pred_check_branch
          %245 = sbr.rel (%p243) target = $region28
        $region27: #{tpu_custom_call.1} parent=11 // pred_region
          _
        $region28: #{tpu_custom_call.1} parent=11 // pred_fallthru
          _
        // Predicated region
        $region29: #{tpu_custom_call.1} parent=11 // pred_check
          %p246 = pneg %p120
        $region30: #{tpu_custom_call.1} parent=11 // pred_check_branch
          %248 = sbr.rel (%p246) target = $region32
        $region31: #{tpu_custom_call.1} parent=11 // pred_region
          _
        $region32: #{tpu_custom_call.1} parent=11 // pred_fallthru
          _
      $region12: #{tpu_custom_call.1} parent=5 // pred_fallthru
        _
      %p249 = scmp.lt.s32.totalorder %s15, 2
      // Predicated region
      $region33: #{tpu_custom_call.1} parent=5 // pred_check
        %p250 = pneg %p249
      $region34: #{tpu_custom_call.1} parent=5 // pred_check_branch
        %252 = sbr.rel (%p250) target = $region36
      $region35: #{tpu_custom_call.1} parent=5 // pred_region
        // Predicated region
        $region37: #{tpu_custom_call.1} parent=35 // pred_check
          %p253 = pneg %p140
        $region38: #{tpu_custom_call.1} parent=35 // pred_check_branch
          %255 = sbr.rel (%p253) target = $region40
        $region39: #{tpu_custom_call.1} parent=35 // pred_region
          %p256 = scmp.lt.s32.totalorder %s15, 1
          %s257 = scalar_select %p256, %s15, 1
          %s258 = smul.addr %s257, 8
          %s259 = scalar_lea.vmem %s5, %s258
        $region40: #{tpu_custom_call.1} parent=35 // pred_fallthru
          _
        // Predicated region
        $region41: #{tpu_custom_call.1} parent=35 // pred_check
          %p260 = pneg %p166
        $region42: #{tpu_custom_call.1} parent=35 // pred_check_branch
          %262 = sbr.rel (%p260) target = $region44
        $region43: #{tpu_custom_call.1} parent=35 // pred_region
          %p263 = scmp.lt.s32.totalorder %s15, 1
          %s264 = scalar_select %p263, %s15, 1
          %s265 = smul.addr %s264, 8
          %s266 = scalar_lea.vmem %s6, %s265
        $region44: #{tpu_custom_call.1} parent=35 // pred_fallthru
          _
        // Predicated region
        $region45: #{tpu_custom_call.1} parent=35 // pred_check
          %p267 = pneg %p192
        $region46: #{tpu_custom_call.1} parent=35 // pred_check_branch
          %269 = sbr.rel (%p267) target = $region48
        $region47: #{tpu_custom_call.1} parent=35 // pred_region
          %p270 = scmp.lt.s32.totalorder %s15, 1
          %s271 = scalar_select %p270, %s15, 1
          %s272 = smul.addr %s271, 8
          %s273 = scalar_lea.vmem %s7, %s272
        $region48: #{tpu_custom_call.1} parent=35 // pred_fallthru
          _
      $region36: #{tpu_custom_call.1} parent=5 // pred_fallthru
        _
      %p274 = scmp.le.s32.totalorder 1, %s15
      %p275 = scmp.lt.s32.totalorder %s15, 3
      %p276 = pnand %p274, %p275
      %p277 = pneg %p276
      // Predicated region
      $region49: #{tpu_custom_call.1} parent=5 // pred_check
        _
      $region50: #{tpu_custom_call.1} parent=5 // pred_check_branch
        %279 = sbr.rel (%p276) target = $region52
      $region51: #{tpu_custom_call.1} parent=5 // pred_region
        %s280 = ssub.s32 %s15, 1
        %p281 = pneg %p36
        %p282 = pneg %p33
        %p283 = pneg %p57
        %p284 = pneg %p54
        %p285 = pneg %p78
        %p286 = pneg %p75
        %p287 = pneg %p99
        %p288 = pneg %p96
        %p289 = pneg %p120
        %p290 = pneg %p117
        %p291 = scmp.lt.s32.totalorder %s20, 1
        %s292 = scalar_select %p291, %s20, 1
        %s293 = smul.addr %s292, 8
        %s294 = scalar_lea.vmem %s5, %s293
        %p295 = pneg %p146
        %p296 = pneg %p143
        %p297 = scmp.lt.s32.totalorder %s20, 1
        %s298 = scalar_select %p297, %s20, 1
        %s299 = smul.addr %s298, 8
        %s300 = scalar_lea.vmem %s6, %s299
        %p301 = pneg %p172
        %p302 = pneg %p169
        %p303 = scmp.lt.s32.totalorder %s20, 1
        %s304 = scalar_select %p303, %s20, 1
        %s305 = smul.addr %s304, 8
        %s306 = scalar_lea.vmem %s7, %s305
        %p307 = pneg %p198
        %p308 = pneg %p195
        %p309 = pneg %p219
        %p310 = pneg %p216
        %p311 = scmp.lt.s32.totalorder %s20, 1
        %s312 = scalar_select %p311, %s20, 1
        %s313 = smul.addr %s312, 8
        %s314 = scalar_lea.vmem %s5, %s313
        %p315 = scmp.lt.s32.totalorder %s20, 1
        %s316 = scalar_select %p315, %s20, 1
        %s317 = smul.addr %s316, 8
        %s318 = scalar_lea.vmem %s6, %s317
        %p319 = scmp.lt.s32.totalorder %s20, 1
        %s320 = scalar_select %p319, %s20, 1
        %s321 = smul.addr %s320, 8
        %s322 = scalar_lea.vmem %s7, %s321
        %p323 = scmp.eq.s32.totalorder %s20, 0
        // Predicated region
        $region53: #{tpu_custom_call.1} parent=51 // pred_check
          %p324 = pneg %p323
        $region54: #{tpu_custom_call.1} parent=51 // pred_check_branch
          %326 = sbr.rel (%p324) target = $region56
        $region55: #{tpu_custom_call.1} parent=51 // pred_region
          %327 = vst [vmem:[#allocation2] sm:$0xff] 0.0
        $region56: #{tpu_custom_call.1} parent=51 // pred_fallthru
          _
        %v328 = vld [vmem:[%s314] sm:$0xff]
        %v329 = vld [vmem:[%s318] sm:$0xff]
        %v330 = vld [vmem:[%s322] sm:$0xff]
        %v331 = vld [vmem:[%s0] sm:$0xff]
        %333 = vset.pattern.permute.xlu0 0
        %334 = vperm.xlu0 %333, %v331
        %v335 = vpop.permute.xlu0 %334
        %v337 = vmul.f32 %v335, %v328
        %v338 = vld [vmem:[%s1] sm:$0xff]
        %340 = vset.pattern.permute.xlu0 0
        %341 = vperm.xlu0 %340, %v338
        %v342 = vpop.permute.xlu0 %341
        %v344 = vmul.f32 %v342, %v330
        %v345 = vadd.f32 %v337, %v344
        %v346 = vld [vmem:[%s2] sm:$0xff]
        %348 = vset.pattern.permute.xlu0 0
        %349 = vperm.xlu0 %348, %v346
        %v350 = vpop.permute.xlu0 %349
        %v352 = vadd.f32 %v350, 0.0
        %v353 = vrot.slane %v329, 3
        %v354 = vrot.slane %v345, 3
        %v355 = vld [vmem:[%s3] sm:$0xff]
        %357 = vset.pattern.permute.xlu0 0
        %358 = vperm.xlu0 %357, %v355
        %v359 = vpop.permute.xlu0 %358
        %v361 = vmul.f32 %v359, %v353
        %v362 = vadd.f32 %v352, %v361
        %v363 = vld [vmem:[%s4] sm:$0xff]
        %365 = vset.pattern.permute.xlu0 0
        %366 = vperm.xlu0 %365, %v363
        %v367 = vpop.permute.xlu0 %366
        %v369 = vmul.f32 %v367, %v354
        %v370 = vadd.f32 %v362, %v369
        %v371 = vrot.slane %v329, 2
        %v372 = vrot.slane %v345, 2
        %s373 = scalar_lea.vmem %s3, 8
        %v374 = vld [vmem:[%s373] sm:$0xff]
        %376 = vset.pattern.permute.xlu0 0
        %377 = vperm.xlu0 %376, %v374
        %v378 = vpop.permute.xlu0 %377
        %v380 = vmul.f32 %v378, %v371
        %v381 = vadd.f32 %v370, %v380
        %s382 = scalar_lea.vmem %s4, 8
        %v383 = vld [vmem:[%s382] sm:$0xff]
        %385 = vset.pattern.permute.xlu0 0
        %386 = vperm.xlu0 %385, %v383
        %v387 = vpop.permute.xlu0 %386
        %v389 = vmul.f32 %v387, %v372
        %v390 = vadd.f32 %v381, %v389
        %v391 = vrot.slane %v329, 1
        %v392 = vrot.slane %v345, 1
        %s393 = scalar_lea.vmem %s3, 16
        %v394 = vld [vmem:[%s393] sm:$0xff]
        %396 = vset.pattern.permute.xlu0 0
        %397 = vperm.xlu0 %396, %v394
        %v398 = vpop.permute.xlu0 %397
        %v400 = vmul.f32 %v398, %v391
        %v401 = vadd.f32 %v390, %v400
        %s402 = scalar_lea.vmem %s4, 16
        %v403 = vld [vmem:[%s402] sm:$0xff]
        %405 = vset.pattern.permute.xlu0 0
        %406 = vperm.xlu0 %405, %v403
        %v407 = vpop.permute.xlu0 %406
        %v409 = vmul.f32 %v407, %v392
        %v410 = vadd.f32 %v401, %v409
        %s411 = scalar_lea.vmem %s3, 24
        %v412 = vld [vmem:[%s411] sm:$0xff]
        %414 = vset.pattern.permute.xlu0 0
        %415 = vperm.xlu0 %414, %v412
        %v416 = vpop.permute.xlu0 %415
        %v418 = vmul.f32 %v416, %v329
        %v419 = vadd.f32 %v410, %v418
        %s420 = scalar_lea.vmem %s4, 24
        %v421 = vld [vmem:[%s420] sm:$0xff]
        %423 = vset.pattern.permute.xlu0 0
        %424 = vperm.xlu0 %423, %v421
        %v425 = vpop.permute.xlu0 %424
        %v427 = vmul.f32 %v425, %v345
        %v428 = vadd.f32 %v419, %v427
        %v429 = vrot.slane %v329, 7
        %v430 = vrot.slane %v345, 7
        %s431 = scalar_lea.vmem %s3, 32
        %v432 = vld [vmem:[%s431] sm:$0xff]
        %434 = vset.pattern.permute.xlu0 0
        %435 = vperm.xlu0 %434, %v432
        %v436 = vpop.permute.xlu0 %435
        %v438 = vmul.f32 %v436, %v429
        %v439 = vadd.f32 %v428, %v438
        %s440 = scalar_lea.vmem %s4, 32
        %v441 = vld [vmem:[%s440] sm:$0xff]
        %443 = vset.pattern.permute.xlu0 0
        %444 = vperm.xlu0 %443, %v441
        %v445 = vpop.permute.xlu0 %444
        %v447 = vmul.f32 %v445, %v430
        %v448 = vadd.f32 %v439, %v447
        %v449 = vrot.slane %v329, 6
        %v450 = vrot.slane %v345, 6
        %s451 = scalar_lea.vmem %s3, 40
        %v452 = vld [vmem:[%s451] sm:$0xff]
        %454 = vset.pattern.permute.xlu0 0
        %455 = vperm.xlu0 %454, %v452
        %v456 = vpop.permute.xlu0 %455
        %v458 = vmul.f32 %v456, %v449
        %v459 = vadd.f32 %v448, %v458
        %s460 = scalar_lea.vmem %s4, 40
        %v461 = vld [vmem:[%s460] sm:$0xff]
        %463 = vset.pattern.permute.xlu0 0
        %464 = vperm.xlu0 %463, %v461
        %v465 = vpop.permute.xlu0 %464
        %v467 = vmul.f32 %v465, %v450
        %v468 = vadd.f32 %v459, %v467
        %v469 = vrot.slane %v329, 5
        %v470 = vrot.slane %v345, 5
        %s471 = scalar_lea.vmem %s3, 48
        %v472 = vld [vmem:[%s471] sm:$0xff]
        %474 = vset.pattern.permute.xlu0 0
        %475 = vperm.xlu0 %474, %v472
        %v476 = vpop.permute.xlu0 %475
        %v478 = vmul.f32 %v476, %v469
        %v479 = vadd.f32 %v468, %v478
        %s480 = scalar_lea.vmem %s4, 48
        %v481 = vld [vmem:[%s480] sm:$0xff]
        %483 = vset.pattern.permute.xlu0 0
        %484 = vperm.xlu0 %483, %v481
        %v485 = vpop.permute.xlu0 %484
        %v487 = vmul.f32 %v485, %v470
        %v488 = vadd.f32 %v479, %v487
        %v489 = vld [vmem:[#allocation2] sm:$0xff]
        %v490 = vsub.f32 %v330, %v488
        %v491 = vand.u32 2147483647, %v490
        %v492 = vadd.f32 %v489, %v491
        %493 = vst [vmem:[#allocation2] sm:$0xff] %v492
        %p494 = scmp.eq.s32.totalorder %s20, 1
        // Predicated region
        $region57: #{tpu_custom_call.1} parent=51 // pred_check
          %p495 = pneg %p494
        $region58: #{tpu_custom_call.1} parent=51 // pred_check_branch
          %497 = sbr.rel (%p495) target = $region60
        $region59: #{tpu_custom_call.1} parent=51 // pred_region
          %v498 = vld [vmem:[#allocation2] sm:$0xff]
          %499 = vadd.xlane.f32.xlu0 %v498
          %v500 = vpop.xlane.xlu0 %499
          %v501 = vrot.slane %v500, 4
          %v502 = vadd.f32 %v500, %v501
          %v503 = vrot.slane %v502, 2
          %v504 = vadd.f32 %v502, %v503
          %v505 = vrot.slane %v504, 1
          %v506 = vadd.f32 %v504, %v505
          %s507 = vtos %v506
          %s508 = smul.f32 %s507, 0.00048828125
          %s509 = scalar_lea.smem [#allocation3], 0
          %510 = sst [smem:[%s509]] %s508
        $region60: #{tpu_custom_call.1} parent=51 // pred_fallthru
          _
        // Predicated region
        $region61: #{tpu_custom_call.1} parent=51 // pred_check
          %p511 = pneg %p216
        $region62: #{tpu_custom_call.1} parent=51 // pred_check_branch
          %513 = sbr.rel (%p511) target = $region64
        $region63: #{tpu_custom_call.1} parent=51 // pred_region
          %s515 = ssub.s32 16, 16
          %516 = vsyncadd [#allocation4], %s515
          %519 = dma.smem_to_hbm [#allocation3], 16, %s8, [#allocation4]
        $region64: #{tpu_custom_call.1} parent=51 // pred_fallthru
          _
        // Predicated region
        $region65: #{tpu_custom_call.1} parent=51 // pred_check
          %p520 = pneg %p216
        $region66: #{tpu_custom_call.1} parent=51 // pred_check_branch
          %522 = sbr.rel (%p520) target = $region68
        $region67: #{tpu_custom_call.1} parent=51 // pred_region
          %523 = dma.done [#allocation4], 16
        $region68: #{tpu_custom_call.1} parent=51 // pred_fallthru
          _
        %524 = sfence
      $region52: #{tpu_custom_call.1} parent=5 // pred_fallthru
        _
      %p525 = scmp.le.s32.totalorder 2, %s15
      // Predicated region
      $region69: #{tpu_custom_call.1} parent=5 // pred_check
        %p526 = pneg %p525
      $region70: #{tpu_custom_call.1} parent=5 // pred_check_branch
        %528 = sbr.rel (%p526) target = $region72
      $region71: #{tpu_custom_call.1} parent=5 // pred_region
        %s529 = ssub.s32 %s15, 2
      $region72: #{tpu_custom_call.1} parent=5 // pred_fallthru
        _
    $region6: #{tpu_custom_call.1} parent=1 // loop_footer
      %s19 = sadd.s32 1, %s15
    $region7: #{tpu_custom_call.1} parent=1 // loop_footer_branch
      %14 = sbr.rel target = $region3
    $region8: #{tpu_custom_call.1} parent=1 // loop_exit
      _
    %530 = vsyncpa [#allocation4], 1
    %s531 = scalar_lea.sflag [#allocation4], 1
    %532 = vsyncpa %s531, 1

</llo_original>
